<compile_context>
chip_gen: v7x
topology: tpu7x:2x2x1
jax: 0.10.0
libtpu: 0.0.40
codegen_flags: <defaults>
</compile_context>

<pallas_src>
import functools

import jax
import jax.numpy as jnp
from jax.experimental import pallas as pl
from jax.experimental.pallas import tpu as pltpu

_LANE = 128
_SUBLANE = 8
_BN_EPS = 1e-5
_X_TILE_VMEM_BUDGET = 8 * 1024 * 1024  # bytes for the double-buffered x tile


def _round_up(x, m):
    return ((x + m - 1) // m) * m


def _pick_tile_rows(tile_rows, n_rows, f_dim, itemsize):
    """Row-tile size as a function of F and dtype; v7x-safe (<=2048 rows)."""
    rows_cap = _round_up(n_rows, _SUBLANE)
    if tile_rows is None:
        per_buf = _X_TILE_VMEM_BUDGET // 2          # double-buffered stream
        tile_rows = per_buf // max(1, f_dim * itemsize)
        tile_rows = min(tile_rows, 2048)
    tile_rows = max(_SUBLANE, min(int(tile_rows), rows_cap))
    return _round_up(tile_rows, _SUBLANE)


def _bn_stats_kernel(x_ref, w_ref, sum_ref, sumsq_ref, *,
                     n_rows, steps_per_shard):
    """Streaming matmul + masked per-channel sum / sum-of-squares.

    x_ref:   (tile_r, F) one row tile of the flattened features (bf16/f32).
    w_ref:   (F, o_pad)  zero-padded linear weight (resident).
    sum_ref / sumsq_ref: (8, o_pad) f32 per-shard partial statistics
                         (output blocks, resident across the reduction axis).
    """
    shard = pl.program_id(0)
    step = pl.program_id(1)
    tile_r = x_ref.shape[0]
    o_pad = sum_ref.shape[-1]

    @pl.when(step == 0)
    def _init():
        sum_ref[...] = jnp.zeros_like(sum_ref)
        sumsq_ref[...] = jnp.zeros_like(sumsq_ref)

    # MXU matmul with f32 accumulation.  Bias is folded away (cancelled
    # exactly by the BatchNorm mean subtraction).
    y = jnp.dot(x_ref[...], w_ref[...], preferred_element_type=jnp.float32)

    # Mask ragged tail rows (and any clamped duplicate block past the end of
    # the array) so they contribute exactly zero to the statistics.
    row0 = (shard * steps_per_shard + step) * tile_r
    rows = row0 + jax.lax.broadcasted_iota(jnp.int32, (tile_r, 1), 0)
    y = jnp.where(rows < n_rows, y, 0.0)

    # Deferred sublane reduction: collapse tile_r -> 8 rows with pure vreg
    # (VALU) adds; the final 8 -> 1 cross-sublane reduce happens once in the
    # finalize kernel instead of once per grid step.
    y8 = y.reshape(tile_r // _SUBLANE, _SUBLANE, o_pad)
    sum_ref[...] += jnp.sum(y8, axis=0)
    sumsq_ref[...] += jnp.sum(y8 * y8, axis=0)


def _bn_sigmoid_kernel(sum_ref, sumsq_ref, xlast_ref, w_ref, out_ref, *,
                       n_rows):
    """Combine per-shard stats, project the pre-gathered last-frame rows,
    apply training-mode BatchNorm (gamma=1, beta=0, biased var) + sigmoid."""
    o_pad = out_ref.shape[-1]
    total = jnp.sum(sum_ref[...].reshape(-1, o_pad), axis=0, keepdims=True)
    total_sq = jnp.sum(sumsq_ref[...].reshape(-1, o_pad), axis=0, keepdims=True)

    inv_n = 1.0 / float(n_rows)
    mean = total * inv_n
    # Single-pass variance in f32; inputs are O(1) activations so this is
    # well-conditioned.  Switch to a shifted/two-pass scheme if n_rows grows
    # very large or activations acquire a large common mean.
    var = jnp.maximum(total_sq * inv_n - mean * mean, 0.0)
    inv_std = jax.lax.rsqrt(var + _BN_EPS)

    sel = jnp.dot(xlast_ref[...], w_ref[...], preferred_element_type=jnp.float32)
    out_ref[...] = jax.nn.sigmoid((sel - mean) * inv_std).astype(out_ref.dtype)


def avb_wav2vec_head(features, frame_lengths, w, b=None, *,
                     tile_rows=None, num_row_shards=2,
                     compute_dtype=jnp.bfloat16):
    """Linear -> BatchNorm1d(train, gamma=1, beta=0) -> Sigmoid -> last-frame
    gather, matching AvbWav2vec.forward() after feature extraction.

    features:      (B, T, F) -- ideally already in `compute_dtype` so the
                   kernel streams it from HBM without an extra cast copy.
    frame_lengths: (B,) int -- valid frame count per batch element.
    w, b:          nn.Linear(feature, num_outs) parameters.  `b` is accepted
                   for API parity but cancels exactly inside the BatchNorm.
    num_row_shards: leading "parallel" grid axis; 2 uses both TensorCores on
                   v7x and is a harmless serial split on v5e/v6e.
    """
    del b  # cancelled exactly by BatchNorm's per-channel mean subtraction
    B, T, F = features.shape
    O = w.shape[1]
    n_rows = B * T
    o_pad = _round_up(O, _LANE)

    # Flattened, *unpadded* feature slab.  reshape of leading dims is free;
    # the cast below only triggers if upstream did not emit compute_dtype.
    x2d = features.reshape(n_rows, F)
    if x2d.dtype != compute_dtype:
        x2d = x2d.astype(compute_dtype)
    itemsize = jnp.dtype(compute_dtype).itemsize

    tile_r = _pick_tile_rows(tile_rows, n_rows, F, itemsize)
    grid_r = pl.cdiv(n_rows, tile_r)
    n_shards = max(1, min(int(num_row_shards), grid_r))
    steps_per_shard = pl.cdiv(grid_r, n_shards)

    # Tiny arrays: pad/cast in the wrapper is negligible.
    w_pad = jnp.pad(w, ((0, 0), (0, o_pad - O))).astype(compute_dtype)

    # Pre-gather the "last valid frame" feature rows in the wrapper (B rows);
    # their projection happens once in the finalize kernel.
    last_index = jnp.clip(frame_lengths.astype(jnp.int32) - 1, 0, T - 1)
    x_last = features[jnp.arange(B), last_index, :].astype(compute_dtype)

    # VMEM footprint of the streaming kernel (x double-buffered, weight
    # double-buffered by default -- a constant-index single buffer would save
    # ~F*o_pad bytes, kept at the default to stay on the proven path).
    x_buf_bytes = 2 * tile_r * F * itemsize
    w_buf_bytes = 2 * F * o_pad * itemsize
    stat_buf_bytes = 2 * 2 * _SUBLANE * o_pad * 4
    vmem_limit = max(16 << 20,
                     int(x_buf_bytes + w_buf_bytes + stat_buf_bytes) + (8 << 20))

    cost = pl.CostEstimate(
        flops=2 * n_rows * F * o_pad,
        transcendentals=0,
        bytes_accessed=(n_rows * F + F * o_pad) * itemsize
        + 2 * n_shards * _SUBLANE * o_pad * 4,
    )

    def _x_index_map(s, r):
        # Clamp so a shard whose logical block runs past the end re-reads a
        # valid block; its rows are fully masked in-kernel (contribute 0).
        return (jnp.minimum(s * steps_per_shard + r, grid_r - 1), 0)

    sums, sumsqs = pl.pallas_call(
        functools.partial(_bn_stats_kernel, n_rows=n_rows,
                          steps_per_shard=steps_per_shard),
        out_shape=(
            jax.ShapeDtypeStruct((n_shards, _SUBLANE, o_pad), jnp.float32),
            jax.ShapeDtypeStruct((n_shards, _SUBLANE, o_pad), jnp.float32),
        ),
        grid_spec=pltpu.PrefetchScalarGridSpec(
            num_scalar_prefetch=0,
            grid=(n_shards, steps_per_shard),
            in_specs=[
                pl.BlockSpec((tile_r, F), _x_index_map),
                pl.BlockSpec((F, o_pad), lambda s, r: (0, 0)),
            ],
            out_specs=(
                pl.BlockSpec((None, _SUBLANE, o_pad), lambda s, r: (s, 0, 0)),
                pl.BlockSpec((None, _SUBLANE, o_pad), lambda s, r: (s, 0, 0)),
            ),
        ),
        compiler_params=pltpu.CompilerParams(
            dimension_semantics=("parallel", "arbitrary"),
            vmem_limit_bytes=vmem_limit,
        ),
        cost_estimate=cost,
    )(x2d, w_pad)

    # Tiny finalize kernel: everything resident in VMEM, single invocation.
    out_pad = pl.pallas_call(
        functools.partial(_bn_sigmoid_kernel, n_rows=n_rows),
        out_shape=jax.ShapeDtypeStruct((B, o_pad), jnp.float32),
    )(sums, sumsqs, x_last, w_pad)

    return out_pad[:, :O]


def synthetic_extractor(waveform, lengths, hop, feature, key,
                        dtype=jnp.bfloat16):
    """Deterministic stand-in for bundle.get_model().extract_features().
    Emits features directly in the kernel's compute dtype (no wrapper cast)."""
    B, L = waveform.shape
    T = L // hop
    frames = waveform[:, : T * hop].reshape(B, T, hop)
    proj = jax.random.normal(key, (hop, feature), dtype=jnp.float32) * 0.1
    feats = jnp.einsum("bth,hf->btf", frames, proj).astype(dtype)
    frame_lengths = jnp.clip(lengths // hop, 1, T).astype(jnp.int32)
    return feats, frame_lengths


def reference_head(features, frame_lengths, w, b):
    """Pure-JAX f32 reference: linear -> BN1d(train) -> sigmoid -> gather."""
    B, T, F = features.shape
    x = features.astype(jnp.float32).reshape(B * T, F)
    y = x @ w + b
    mean = jnp.mean(y, axis=0, keepdims=True)
    var = jnp.mean((y - mean) ** 2, axis=0, keepdims=True)
    y = (y - mean) / jnp.sqrt(var + _BN_EPS)
    y = jax.nn.sigmoid(y).reshape(B, T, -1)
    last = jnp.clip(frame_lengths.astype(jnp.int32) - 1, 0, T - 1)
    return y[jnp.arange(B), last, :]


if __name__ == "__main__":
    key = jax.random.PRNGKey(0)
    k_wav, k_proj, k_w, k_b = jax.random.split(key, 4)

    B, L, HOP, FEATURE, NUM_OUTS = 2, 128, 16, 32, 4

    # Raw inputs (as the PyTorch module receives): waveform + sample lengths.
    waveform = jax.random.normal(k_wav, (B, L), dtype=jnp.float32)
    lengths = jnp.array([128, 96], dtype=jnp.int32)

    # Stand-in feature extraction (plain JAX glue), emitting bf16 features.
    features, frame_lengths = synthetic_extractor(
        waveform, lengths, HOP, FEATURE, k_proj)

    # Deterministic head parameters (nn.Linear(feature, num_outs)).
    w = jax.random.normal(k_w, (FEATURE, NUM_OUTS), dtype=jnp.float32) * 0.1
    b = jax.random.normal(k_b, (NUM_OUTS,), dtype=jnp.float32) * 0.1

    ref = reference_head(features, frame_lengths, w, b)

    # Small explicit tiles: exercises a multi-step, two-shard grid
    # (B*T = 16 rows -> 2 row tiles, one per shard).
    out_small = avb_wav2vec_head(features, frame_lengths, w, b,
                                 tile_rows=8, num_row_shards=2)
    out_small = jax.block_until_ready(out_small)
    assert out_small.shape == (B, NUM_OUTS)
    assert jnp.allclose(out_small, ref, atol=2e-2, rtol=2e-2), (out_small, ref)

    # Default path: auto-derived tile size, bf16 streaming slab.
    out_default = avb_wav2vec_head(features, frame_lengths, w, b)
    out_default = jax.block_until_ready(out_default)
    assert out_default.shape == (B, NUM_OUTS)
    assert jnp.allclose(out_default, ref, atol=2e-2, rtol=2e-2), (out_default, ref)

    print("KERNEL_OK")
</pallas_src>

<mosaic_0001>
module attributes {stable_mosaic.version = 11 : i64} {
  func.func @_bn_stats_kernel(%arg0: i32, %arg1: i32, %arg2: memref<8x32xbf16, #tpu.memory_space<vmem>>, %arg3: memref<32x128xbf16, #tpu.memory_space<vmem>>, %arg4: memref<1x8x128xf32, #tpu.memory_space<vmem>>, %arg5: memref<1x8x128xf32, #tpu.memory_space<vmem>>) attributes {dimension_semantics = [#tpu.dimension_semantics<parallel>, #tpu.dimension_semantics<arbitrary>], iteration_bounds = array<i64: 2, 1>, scalar_prefetch = 0 : i64, scratch_operands = 0 : i64, tpu.core_type = #tpu.core_type<tc>, window_params = [{transform_indices = @transform_0, window_bounds = array<i64: 8, 32>}, {pipeline_mode = #tpu.pipeline_mode<synchronous>, transform_indices = @transform_1, window_bounds = array<i64: 32, 128>}, {transform_indices = @transform_2, window_bounds = array<i64: 1, 8, 128>}, {transform_indices = @transform_3, window_bounds = array<i64: 1, 8, 128>}]} {
    %c0_i32 = arith.constant 0 : i32
    %0 = arith.cmpi eq, %arg1, %c0_i32 : i32
    %1 = arith.extui %0 : i1 to i32
    %c0_i32_0 = arith.constant 0 : i32
    %2 = arith.cmpi ne, %1, %c0_i32_0 : i32
    scf.if %2 {
      %cst_19 = arith.constant 0.000000e+00 : f32
      %34 = vector.broadcast %cst_19 : f32 to vector<8x128xf32>
      %c0_20 = arith.constant 0 : index
      %c0_21 = arith.constant 0 : index
      %c0_22 = arith.constant 0 : index
      %35 = vector.load %arg4[%c0_20, %c0_21, %c0_22] : memref<1x8x128xf32, #tpu.memory_space<vmem>>, vector<1x8x128xf32>
      %36 = vector.shape_cast %35 : vector<1x8x128xf32> to vector<8x128xf32>
      %37 = vector.shape_cast %34 : vector<8x128xf32> to vector<1x8x128xf32>
      tpu.vector_store %arg4[%c0_20, %c0_21, %c0_22], %37 {strides = array<i32>} : memref<1x8x128xf32, #tpu.memory_space<vmem>>, vector<1x8x128xf32>,
      %cst_23 = arith.constant 0.000000e+00 : f32
      %38 = vector.broadcast %cst_23 : f32 to vector<8x128xf32>
      %c0_24 = arith.constant 0 : index
      %c0_25 = arith.constant 0 : index
      %c0_26 = arith.constant 0 : index
      %39 = vector.load %arg5[%c0_24, %c0_25, %c0_26] : memref<1x8x128xf32, #tpu.memory_space<vmem>>, vector<1x8x128xf32>
      %40 = vector.shape_cast %39 : vector<1x8x128xf32> to vector<8x128xf32>
      %41 = vector.shape_cast %38 : vector<8x128xf32> to vector<1x8x128xf32>
      tpu.vector_store %arg5[%c0_24, %c0_25, %c0_26], %41 {strides = array<i32>} : memref<1x8x128xf32, #tpu.memory_space<vmem>>, vector<1x8x128xf32>,
    } else {
    }
    %c0 = arith.constant 0 : index
    %c0_1 = arith.constant 0 : index
    %3 = vector.load %arg2[%c0, %c0_1] : memref<8x32xbf16, #tpu.memory_space<vmem>>, vector<8x32xbf16>
    %c0_2 = arith.constant 0 : index
    %c0_3 = arith.constant 0 : index
    %4 = vector.load %arg3[%c0_2, %c0_3] : memref<32x128xbf16, #tpu.memory_space<vmem>>, vector<32x128xbf16>
    %cst = arith.constant dense<0.000000e+00> : vector<8x128xf32>
    %5 = tpu.matmul %3, %4, %cst {dimension_numbers = #tpu.dot_dimension_numbers<[1], [0], [0], [1], [0, 0, 1, 1], [], []>} : vector<8x32xbf16>, vector<32x128xbf16>, vector<8x128xf32> -> vector<8x128xf32>
    %c1_i32 = arith.constant 1 : i32
    %6 = arith.muli %arg0, %c1_i32 : i32
    %7 = arith.addi %6, %arg1 : i32
    %c8_i32 = arith.constant 8 : i32
    %8 = arith.muli %7, %c8_i32 : i32
    %9 = tpu.iota {dimensions = array<i32: 0>} : vector<8x1xi32>
    %10 = vector.broadcast %8 : i32 to vector<8x1xi32>
    %11 = arith.addi %10, %9 : vector<8x1xi32>
    %c16_i32 = arith.constant 16 : i32
    %12 = vector.broadcast %c16_i32 : i32 to vector<8x1xi32>
    %13 = arith.cmpi slt, %11, %12 : vector<8x1xi32>
    %cst_4 = arith.constant 0.000000e+00 : f32
    %14 = vector.shape_cast %13 : vector<8x1xi1> to vector<8x1xi1>
    %15 = vector.broadcast %14 : vector<8x1xi1> to vector<8x128xi1>
    %16 = vector.broadcast %cst_4 : f32 to vector<8x128xf32>
    %17 = arith.select %15, %5, %16 : vector<8x128xi1>, vector<8x128xf32>
    %18 = vector.shape_cast %17 : vector<8x128xf32> to vector<1x8x128xf32>
    %c0_5 = arith.constant 0 : index
    %c0_6 = arith.constant 0 : index
    %c0_7 = arith.constant 0 : index
    %19 = vector.load %arg4[%c0_5, %c0_6, %c0_7] : memref<1x8x128xf32, #tpu.memory_space<vmem>>, vector<1x8x128xf32>
    %20 = vector.shape_cast %19 : vector<1x8x128xf32> to vector<8x128xf32>
    %cst_8 = arith.constant dense<0.000000e+00> : vector<8x128xf32>
    %21 = vector.multi_reduction <add>, %18, %cst_8 [0] : vector<1x8x128xf32> to vector<8x128xf32>
    %22 = arith.addf %20, %21 : vector<8x128xf32>
    %c0_9 = arith.constant 0 : index
    %c0_10 = arith.constant 0 : index
    %c0_11 = arith.constant 0 : index
    %23 = vector.load %arg4[%c0_9, %c0_10, %c0_11] : memref<1x8x128xf32, #tpu.memory_space<vmem>>, vector<1x8x128xf32>
    %24 = vector.shape_cast %23 : vector<1x8x128xf32> to vector<8x128xf32>
    %25 = vector.shape_cast %22 : vector<8x128xf32> to vector<1x8x128xf32>
    tpu.vector_store %arg4[%c0_9, %c0_10, %c0_11], %25 {strides = array<i32>} : memref<1x8x128xf32, #tpu.memory_space<vmem>>, vector<1x8x128xf32>,
    %c0_12 = arith.constant 0 : index
    %c0_13 = arith.constant 0 : index
    %c0_14 = arith.constant 0 : index
    %26 = vector.load %arg5[%c0_12, %c0_13, %c0_14] : memref<1x8x128xf32, #tpu.memory_space<vmem>>, vector<1x8x128xf32>
    %27 = vector.shape_cast %26 : vector<1x8x128xf32> to vector<8x128xf32>
    %28 = arith.mulf %18, %18 : vector<1x8x128xf32>
    %cst_15 = arith.constant dense<0.000000e+00> : vector<8x128xf32>
    %29 = vector.multi_reduction <add>, %28, %cst_15 [0] : vector<1x8x128xf32> to vector<8x128xf32>
    %30 = arith.addf %27, %29 : vector<8x128xf32>
    %c0_16 = arith.constant 0 : index
    %c0_17 = arith.constant 0 : index
    %c0_18 = arith.constant 0 : index
    %31 = vector.load %arg5[%c0_16, %c0_17, %c0_18] : memref<1x8x128xf32, #tpu.memory_space<vmem>>, vector<1x8x128xf32>
    %32 = vector.shape_cast %31 : vector<1x8x128xf32> to vector<8x128xf32>
    %33 = vector.shape_cast %30 : vector<8x128xf32> to vector<1x8x128xf32>
    tpu.vector_store %arg5[%c0_16, %c0_17, %c0_18], %33 {strides = array<i32>} : memref<1x8x128xf32, #tpu.memory_space<vmem>>, vector<1x8x128xf32>,
    return
  }
  func.func @transform_0(%arg0: i32, %arg1: i32) -> (i32, i32) {
    %c1_i32 = arith.constant 1 : i32
    %0 = arith.muli %arg0, %c1_i32 : i32
    %1 = arith.addi %0, %arg1 : i32
    %c1_i32_0 = arith.constant 1 : i32
    %2 = arith.minsi %1, %c1_i32_0 : i32
    %c0_i32 = arith.constant 0 : i32
    %c0_i32_1 = arith.constant 0 : i32
    return %2, %c0_i32 : i32, i32
  }
  func.func @transform_1(%arg0: i32, %arg1: i32) -> (i32, i32) {
    %c0_i32 = arith.constant 0 : i32
    %c0_i32_0 = arith.constant 0 : i32
    %c0_i32_1 = arith.constant 0 : i32
    return %c0_i32, %c0_i32_0 : i32, i32
  }
  func.func @transform_2(%arg0: i32, %arg1: i32) -> (i32, i32, i32) {
    %c0_i32 = arith.constant 0 : i32
    %c0_i32_0 = arith.constant 0 : i32
    %c0_i32_1 = arith.constant 0 : i32
    return %arg0, %c0_i32, %c0_i32_0 : i32, i32, i32
  }
  func.func @transform_3(%arg0: i32, %arg1: i32) -> (i32, i32, i32) {
    %c0_i32 = arith.constant 0 : i32
    %c0_i32_0 = arith.constant 0 : i32
    %c0_i32_1 = arith.constant 0 : i32
    return %arg0, %c0_i32, %c0_i32_0 : i32, i32, i32
  }
}

</mosaic_0001>

<llo_original>
// kernel: tpu_custom_call.1
$region0: #{tpu_custom_call.1}
  #allocation0 [shape = 'u32[]', space=smem, size = 0x4, offset = 0x4, fixed_abs, tag = 'smem constant byte address 0x4 - core index']
  #allocation1 [shape = 'u32[144,128]{1,0:T(1,128)}', space=vmem, size = 0x12000, scoped, tag = 'internal scratch']
  %s0 = inlined_call_operand.hbm [shape: bf16[16,32], index: 0, kind: input, shape index: {}]
  %s1 = inlined_call_operand.hbm [shape: bf16[32,128], index: 1, kind: input, shape index: {}]
  %s2 = inlined_call_operand.hbm [shape: f32[2,8,128], index: 2, kind: output, shape index: {0}]
  %s3 = inlined_call_operand.hbm [shape: f32[2,8,128], index: 3, kind: output, shape index: {1}]
  %4 = xla_tuple %s2, %s3
  %s5 = sld [smem:[#allocation0]]
  $region61: #{tpu_custom_call.1} parent=0
    _
  %s7 = ssub.s32 1, %s5
  %s8 = scalar_select 0, %s7, %s5
  $region1: #{tpu_custom_call.1} parent=0
    #allocation2 [shape = 'u8[4096]{0}', space=vmem, size = 0x1000, scoped, tag = 'input window, operand 0']
    #allocation3 [shape = 's32[2]{0}', space=sflag, size = 0x8, scoped, tag = 'scoped memory for tpu_custom_call.1']
    #allocation4 [shape = 's32[2]{0}', space=sflag, size = 0x8, scoped, tag = 'scoped memory for tpu_custom_call.1']
    #allocation5 [shape = 'u8[8192]{0}', space=vmem, size = 0x2000, scoped, tag = 'input window, operand 1, single buffered']
    #allocation6 [shape = 's32[1]{0}', space=sflag, size = 0x4, scoped, tag = 'scoped memory for tpu_custom_call.1']
    #allocation7 [shape = 'u8[8192]{0}', space=vmem, size = 0x2000, scoped, tag = 'output window, operand 0']
    #allocation8 [shape = 'u8[8192]{0}', space=vmem, size = 0x2000, scoped, tag = 'output window, operand 1']
    #allocation9 [shape = 's32[2]{0}', space=sflag, size = 0x8, scoped, tag = 'scoped memory for tpu_custom_call.1']
    %9 = vsyncpa [#allocation3], 0
    %s10 = scalar_lea.sflag [#allocation3], 1
    %11 = vsyncpa %s10, 0
    %12 = vsyncpa [#allocation6], 0
    %13 = vsyncpa [#allocation4], 0
    %s14 = scalar_lea.sflag [#allocation4], 1
    %15 = vsyncpa %s14, 0
    %16 = vsyncpa [#allocation9], 0
    %s17 = scalar_lea.sflag [#allocation9], 1
    %18 = vsyncpa %s17, 0
    loop: start=0, step=1, limit=4
    $region2: #{tpu_custom_call.1} parent=1 // loop_pre_header
      _
    $region3: #{tpu_custom_call.1} parent=1 // loop_header
      %s20 = sphi 0, %s24
      %p21 = scmp.ge.s32.totalorder %s20, 4
      %s27 = sphi 0, %s39
      %s28 = sphi 0, %s35
      %s29 = sphi 0, %s27
      %s30 = sphi 0, %s28
      %s31 = sphi 0, %s29
      %s32 = sphi 0, %s30
      %s48 = sphi 0, %s50
      %s51 = sphi 0, %s48
      %s52 = sphi 0, %s51
      %s68 = sphi 0, %s52
      %s72 = sphi 0, %s72
      %s74 = sphi 0, %s72
      %s75 = sphi 0, %s74
      %s89 = sphi 0, %s75
      %s95 = sphi 0, %s97
      %s98 = sphi 0, %s95
      %s99 = sphi 0, %s98
      %s115 = sphi 0, %s99
      %s121 = sphi 0, %s123
      %s124 = sphi 0, %s121
      %s125 = sphi 0, %s124
      %s141 = sphi 0, %s125
    $region4: #{tpu_custom_call.1} parent=1 // loop_header_branch
      %23 = sbr.rel (%p21) target = $region8
    $region5: #{tpu_custom_call.1} parent=1 // loop_body
      %s25 = ssub.s32 %s20, 1
      %s26 = ssub.s32 %s20, 2
      %s33 = sadd.s32 1, %s28
      %p34 = scmp.ge.s32.totalorder %s33, 1
      %s35 = scalar_select %p34, 0, %s33
      %s36 = sadd.s32 1, %s27
      %s37 = scalar_select %p34, %s36, %s27
      %p38 = scmp.ge.s32.totalorder %s37, 2
      %s39 = scalar_select %p38, 0, %s37
      %s40 = sadd.s32 %s27, %s28
      %p41 = scmp.lt.s32.totalorder %s40, 1
      %s42 = scalar_select %p41, %s40, 1
      %s43 = sadd.s32 %s39, %s35
      %p44 = scmp.lt.s32.totalorder %s43, 1
      %s45 = scalar_select %p44, %s43, 1
      %s46 = ssub.s32 %s42, %s45
      %p47 = scmp.eq.s32.totalorder %s46, 0
      %s49 = sadd.s32 %s48, 1
      %s50 = scalar_select %p47, %s48, %s49
      %p53 = pneg %p47
      %p54 = scmp.eq.s32.totalorder %s20, 1
      %p55 = por %p53, %p54
      %p56 = scmp.ne.s32.totalorder %s48, %s51
      %p57 = scmp.eq.s32.totalorder %s20, 0
      %p58 = por %p56, %p57
      %p59 = scmp.ne.s32.totalorder %s48, %s51
      %p60 = scmp.eq.s32.totalorder %s25, 1
      %p61 = por %p59, %p60
      %p62 = scmp.ne.s32.totalorder %s51, %s52
      %p63 = scmp.eq.s32.totalorder %s25, 0
      %p64 = por %p62, %p63
      %p65 = scmp.ne.s32.totalorder %s51, %s52
      %p66 = scmp.eq.s32.totalorder %s26, 1
      %p67 = por %p65, %p66
      %p69 = scmp.ne.s32.totalorder %s52, %s68
      %p70 = scmp.eq.s32.totalorder %s26, 0
      %p71 = por %p69, %p70
      %s73 = sadd.s32 %s72, 1
      %p76 = scmp.eq.s32.totalorder %s20, 1
      %p77 = scmp.ne.s32.totalorder %s72, %s74
      %p78 = scmp.eq.s32.totalorder %s20, 0
      %p79 = por %p77, %p78
      %p80 = scmp.ne.s32.totalorder %s72, %s74
      %p81 = scmp.eq.s32.totalorder %s25, 1
      %p82 = por %p80, %p81
      %p83 = scmp.ne.s32.totalorder %s74, %s75
      %p84 = scmp.eq.s32.totalorder %s25, 0
      %p85 = por %p83, %p84
      %p86 = scmp.ne.s32.totalorder %s74, %s75
      %p87 = scmp.eq.s32.totalorder %s26, 1
      %p88 = por %p86, %p87
      %p90 = scmp.ne.s32.totalorder %s75, %s89
      %p91 = scmp.eq.s32.totalorder %s26, 0
      %p92 = por %p90, %p91
      %s93 = ssub.s32 %s27, %s39
      %p94 = scmp.eq.s32.totalorder %s93, 0
      %s96 = sadd.s32 %s95, 1
      %s97 = scalar_select %p94, %s95, %s96
      %p100 = pneg %p94
      %p101 = scmp.eq.s32.totalorder %s20, 1
      %p102 = por %p100, %p101
      %p103 = scmp.ne.s32.totalorder %s95, %s98
      %p104 = scmp.eq.s32.totalorder %s20, 0
      %p105 = por %p103, %p104
      %p106 = scmp.ne.s32.totalorder %s95, %s98
      %p107 = scmp.eq.s32.totalorder %s25, 1
      %p108 = por %p106, %p107
      %p109 = scmp.ne.s32.totalorder %s98, %s99
      %p110 = scmp.eq.s32.totalorder %s25, 0
      %p111 = por %p109, %p110
      %p112 = scmp.ne.s32.totalorder %s98, %s99
      %p113 = scmp.eq.s32.totalorder %s26, 1
      %p114 = por %p112, %p113
      %p116 = scmp.ne.s32.totalorder %s99, %s115
      %p117 = scmp.eq.s32.totalorder %s26, 0
      %p118 = por %p116, %p117
      %s119 = ssub.s32 %s27, %s39
      %p120 = scmp.eq.s32.totalorder %s119, 0
      %s122 = sadd.s32 %s121, 1
      %s123 = scalar_select %p120, %s121, %s122
      %p126 = pneg %p120
      %p127 = scmp.eq.s32.totalorder %s20, 1
      %p128 = por %p126, %p127
      %p129 = scmp.ne.s32.totalorder %s121, %s124
      %p130 = scmp.eq.s32.totalorder %s20, 0
      %p131 = por %p129, %p130
      %p132 = scmp.ne.s32.totalorder %s121, %s124
      %p133 = scmp.eq.s32.totalorder %s25, 1
      %p134 = por %p132, %p133
      %p135 = scmp.ne.s32.totalorder %s124, %s125
      %p136 = scmp.eq.s32.totalorder %s25, 0
      %p137 = por %p135, %p136
      %p138 = scmp.ne.s32.totalorder %s124, %s125
      %p139 = scmp.eq.s32.totalorder %s26, 1
      %p140 = por %p138, %p139
      %p142 = scmp.ne.s32.totalorder %s125, %s141
      %p143 = scmp.eq.s32.totalorder %s26, 0
      %p144 = por %p142, %p143
      %p145 = scmp.le.s32.totalorder 1, %s20
      %p146 = scmp.lt.s32.totalorder %s20, 3
      %p147 = pnand %p145, %p146
      %p148 = pneg %p147
      // Predicated region
      $region9: #{tpu_custom_call.1} parent=5 // pred_check
        _
      $region10: #{tpu_custom_call.1} parent=5 // pred_check_branch
        %150 = sbr.rel (%p147) target = $region12
      $region11: #{tpu_custom_call.1} parent=5 // pred_region
        %s151 = ssub.s32 %s20, 1
        // Predicated region
        $region13: #{tpu_custom_call.1} parent=11 // pred_check
          %p152 = pneg %p85
        $region14: #{tpu_custom_call.1} parent=11 // pred_check_branch
          %154 = sbr.rel (%p152) target = $region16
        $region15: #{tpu_custom_call.1} parent=11 // pred_region
          %s156 = ssub.s32 256, 256
          %157 = vsyncadd [#allocation6], %s156
          %s158 = sshll.u32 [#allocation5], 4
          %s159 = int_to_ptr.vmem [resolvable:$true] %s158
          %164 = dma.hbm_to_vmem [thread:$0]  %s1, 256, %s159, [#allocation6], 64, 64, 4
        $region16: #{tpu_custom_call.1} parent=11 // pred_fallthru
          _
      $region12: #{tpu_custom_call.1} parent=5 // pred_fallthru
        _
      %p165 = scmp.lt.s32.totalorder %s20, 2
      // Predicated region
      $region17: #{tpu_custom_call.1} parent=5 // pred_check
        %p166 = pneg %p165
      $region18: #{tpu_custom_call.1} parent=5 // pred_check_branch
        %168 = sbr.rel (%p166) target = $region20
      $region19: #{tpu_custom_call.1} parent=5 // pred_region
        // Predicated region
        $region21: #{tpu_custom_call.1} parent=19 // pred_check
          %p169 = pneg %p58
        $region22: #{tpu_custom_call.1} parent=19 // pred_check_branch
          %171 = sbr.rel (%p169) target = $region24
        $region23: #{tpu_custom_call.1} parent=19 // pred_region
          %s172 = sand.u32 %s48, 1
          %s173 = scalar_lea.sflag [#allocation3], %s172
          %s174 = sand.u32 %s48, 1
          %s175 = smul.addr %s174, 4
          %s176 = scalar_lea.vmem [#allocation2], %s175
          %s177 = sadd.s32 %s27, %s28
          %p178 = scmp.lt.s32.totalorder %s177, 1
          %s179 = scalar_select %p178, %s177, 1
          %s181 = ssub.s32 64, 64
          %182 = vsyncadd %s173, %s181
          %s183 = smul.addr %s179, 64
          %s184 = scalar_lea.hbm %s0, %s183
          %s186 = sshll.u32 %s176, 4
          %s187 = int_to_ptr.vmem [resolvable:$true] %s186
          %189 = dma.hbm_to_vmem [thread:$0]  %s184, 64, %s187, %s173
        $region24: #{tpu_custom_call.1} parent=19 // pred_fallthru
          _
      $region20: #{tpu_custom_call.1} parent=5 // pred_fallthru
        _
      %p190 = scmp.le.s32.totalorder 1, %s20
      %p191 = scmp.lt.s32.totalorder %s20, 3
      %p192 = pnand %p190, %p191
      %p193 = pneg %p192
      // Predicated region
      $region25: #{tpu_custom_call.1} parent=5 // pred_check
        _
      $region26: #{tpu_custom_call.1} parent=5 // pred_check_branch
        %195 = sbr.rel (%p192) target = $region28
      $region27: #{tpu_custom_call.1} parent=5 // pred_region
        %s196 = ssub.s32 %s20, 1
        %s197 = sand.u32 %s51, 1
        %s198 = scalar_lea.sflag [#allocation3], %s197
        %s199 = sand.u32 %s51, 1
        %s200 = smul.addr %s199, 4
        %s201 = scalar_lea.vmem [#allocation2], %s200
        // Predicated region
        $region29: #{tpu_custom_call.1} parent=27 // pred_check
          %p202 = pneg %p64
        $region30: #{tpu_custom_call.1} parent=27 // pred_check_branch
          %204 = sbr.rel (%p202) target = $region32
        $region31: #{tpu_custom_call.1} parent=27 // pred_region
          %205 = dma.done %s198, 64
        $region32: #{tpu_custom_call.1} parent=27 // pred_fallthru
          _
        // Predicated region
        $region33: #{tpu_custom_call.1} parent=27 // pred_check
          %p206 = pneg %p85
        $region34: #{tpu_custom_call.1} parent=27 // pred_check_branch
          %208 = sbr.rel (%p206) target = $region36
        $region35: #{tpu_custom_call.1} parent=27 // pred_region
          %209 = dma.done [#allocation6], 256
        $region36: #{tpu_custom_call.1} parent=27 // pred_fallthru
          _
        %s210 = sand.u32 %s51, 1
        %s211 = scalar_lea.sflag [#allocation3], %s210
        %s212 = sand.u32 %s51, 1
        %s213 = smul.addr %s212, 4
        %s214 = scalar_lea.vmem [#allocation2], %s213
        %p215 = pneg %p64
        %p216 = pneg %p61
        %p217 = pneg %p85
        %p218 = pneg %p82
        %p219 = pneg %p111
        %p220 = pneg %p108
        %s221 = sand.u32 %s98, 1
        %s222 = scalar_lea.sflag [#allocation4], %s221
        %s223 = sand.u32 %s98, 1
        %s224 = smul.addr %s223, 8
        %s225 = scalar_lea.vmem [#allocation7], %s224
        %p226 = pneg %p137
        %p227 = pneg %p134
        %s228 = sand.u32 %s124, 1
        %s229 = scalar_lea.sflag [#allocation9], %s228
        %s230 = sand.u32 %s124, 1
        %s231 = smul.addr %s230, 8
        %s232 = scalar_lea.vmem [#allocation8], %s231
        %s233 = sadd.s32 %s29, %s30
        %p234 = scmp.lt.s32.totalorder %s233, 1
        %s235 = scalar_select %p234, %s233, 1
        %p237 = scmp.eq.s32.totalorder %s30, 0
        // Predicated region
        $region37: #{tpu_custom_call.1} parent=27 // pred_check
          %p238 = pneg %p237
        $region38: #{tpu_custom_call.1} parent=27 // pred_check_branch
          %240 = sbr.rel (%p238) target = $region40
        $region39: #{tpu_custom_call.1} parent=27 // pred_region
          %241 = vst [vmem:[%s225] sm:$0xff] 0.0
          %242 = vst [vmem:[%s232] sm:$0xff] 0.0
        $region40: #{tpu_custom_call.1} parent=27 // pred_fallthru
          _
        %v243 = vld [vmem:[%s201] sm:$0xf]
        %v244 = vld [vmem:[#allocation5] sm:$0xf]
        %v245 = vld [vmem:[#allocation5 + $0x4] sm:$0xf]
        %v246 = vld [vmem:[#allocation5 + $0x8] sm:$0xf]
        %v247 = vld [vmem:[#allocation5 + $0xc] sm:$0xf]
        %v252 = vunpack.c.l.b16 %v244
        %v253 = vunpack.c.l.b16 %v245
        %v254 = vunpack.c.l.b16 %v246
        %v255 = vunpack.c.l.b16 %v247
        %v256 = vpack.c.b16 %v253, %v252
        %v257 = vpack.c.b16 %v255, %v254
        %vm260 = vcmask 261120
        %v262 = vsel %vm260, %v243, 0
        %264 = vmatprep.subr.bf16.mxu0 0
        %265 = vmatpush1.bf16.msra.mxu0 %v256
        %266 = vmatprep.subr.bf16.mxu0 0
        %267 = vmatpush1.bf16.msra.mxu0 %v257
        %268 = vmatprep.subr.bf16.mxu0 0
        %269 = vmatpush1.bf16.msra.mxu0 0
        %270 = vmatprep.subr.bf16.mxu0 0
        %271 = vmatpush1.bf16.msra.mxu0 0
        %272 = vmatprep.subr.bf16.mxu0 0
        %273 = vmatpush1.bf16.msra.mxu0 0
        %274 = vmatprep.subr.bf16.mxu0 0
        %275 = vmatpush1.bf16.msra.mxu0 0
        %276 = vmatprep.subr.bf16.mxu0 0
        %277 = vmatpush1.bf16.msra.mxu0 0
        %278 = vmatprep.subr.bf16.mxu0 0
        %279 = vmatpush1.bf16.msra.mxu0 0
        %280 = vmatprep.subr.bf16.mxu0 0
        %281 = vmatpush1.bf16.msra.mxu0 0
        %282 = vmatprep.subr.bf16.mxu0 0
        %283 = vmatpush1.bf16.msra.mxu0 0
        %284 = vmatprep.subr.bf16.mxu0 0
        %285 = vmatpush1.bf16.msra.mxu0 0
        %286 = vmatprep.subr.bf16.mxu0 0
        %287 = vmatpush1.bf16.msra.mxu0 0
        %288 = vmatprep.subr.bf16.mxu0 0
        %289 = vmatpush1.bf16.msra.mxu0 0
        %290 = vmatprep.subr.bf16.mxu0 0
        %291 = vmatpush1.bf16.msra.mxu0 0
        %292 = vmatprep.subr.bf16.mxu0 0
        %293 = vmatpush1.bf16.msra.mxu0 0
        %294 = vmatprep.subr.bf16.mxu0 0
        %295 = vmatpush1.bf16.msra.mxu0 0
        %296 = vmatprep.mubr.bf16.mxu0 0
        %297 = vmatmul.mubr.bf16.gmra.mrb[0].mxu0 %v262
        %v298 = vpop.f32.mrb[0].mxu0
        %v299 = vadd.f32 0.0, %v298
        %v300 = vpop.f32.mrb[0].mxu0
        %v301 = vpop.f32.mrb[0].mxu0
        %v302 = vpop.f32.mrb[0].mxu0
        %303 = vdwg.mxu0
        %s304 = sadd.s32 %s29, %s30
        %s305 = smul.u32 %s304, 8
        %v306 = vlaneseq
        %v307 = vshrl.u32 %v306, 7
        %v308 = vstv %s305
        %v309 = vadd.s32 %v308, %v307
        %vm310 = vcmp.lt.s32.totalorder %v309, 16
        %v311 = vsel %vm310, 1, 0
        %vm312 = vcmp.eq.s32.totalorder %v311, 1
        %v313 = vsel %vm312, %v299, 0.0
        %v314 = vld [vmem:[%s225] sm:$0xff]
        %v315 = vadd.f32 %v313, 0.0
        %v316 = vadd.f32 %v314, %v315
        %317 = vst [vmem:[%s225] sm:$0xff] %v316
        %v318 = vld [vmem:[%s232] sm:$0xff]
        %v319 = vmul.f32 %v313, %v313
        %v320 = vadd.f32 %v319, 0.0
        %v321 = vadd.f32 %v318, %v320
        %322 = vst [vmem:[%s232] sm:$0xff] %v321
        %s323 = sand.u32 %s98, 1
        %s324 = scalar_lea.sflag [#allocation4], %s323
        %s325 = sand.u32 %s98, 1
        %s326 = smul.addr %s325, 8
        %s327 = scalar_lea.vmem [#allocation7], %s326
        %s328 = sand.u32 %s124, 1
        %s329 = scalar_lea.sflag [#allocation9], %s328
        %s330 = sand.u32 %s124, 1
        %s331 = smul.addr %s330, 8
        %s332 = scalar_lea.vmem [#allocation8], %s331
        // Predicated region
        $region41: #{tpu_custom_call.1} parent=27 // pred_check
          %p333 = pneg %p108
        $region42: #{tpu_custom_call.1} parent=27 // pred_check_branch
          %335 = sbr.rel (%p333) target = $region44
        $region43: #{tpu_custom_call.1} parent=27 // pred_region
          %s337 = ssub.s32 128, 128
          %338 = vsyncadd %s324, %s337
          %s339 = smul.addr %s29, 128
          %s340 = scalar_lea.hbm %s2, %s339
          %s342 = sshll.u32 %s327, 4
          %s343 = int_to_ptr.vmem [resolvable:$true] %s342
          %345 = dma.vmem_to_hbm [thread:$0]  %s343, 128, %s340, %s324
        $region44: #{tpu_custom_call.1} parent=27 // pred_fallthru
          _
        // Predicated region
        $region45: #{tpu_custom_call.1} parent=27 // pred_check
          %p346 = pneg %p134
        $region46: #{tpu_custom_call.1} parent=27 // pred_check_branch
          %348 = sbr.rel (%p346) target = $region48
        $region47: #{tpu_custom_call.1} parent=27 // pred_region
          %s350 = ssub.s32 128, 128
          %351 = vsyncadd %s329, %s350
          %s352 = smul.addr %s29, 128
          %s353 = scalar_lea.hbm %s3, %s352
          %s355 = sshll.u32 %s332, 4
          %s356 = int_to_ptr.vmem [resolvable:$true] %s355
          %358 = dma.vmem_to_hbm [thread:$0]  %s356, 128, %s353, %s329
        $region48: #{tpu_custom_call.1} parent=27 // pred_fallthru
          _
      $region28: #{tpu_custom_call.1} parent=5 // pred_fallthru
        _
      %p359 = scmp.le.s32.totalorder 2, %s20
      // Predicated region
      $region49: #{tpu_custom_call.1} parent=5 // pred_check
        %p360 = pneg %p359
      $region50: #{tpu_custom_call.1} parent=5 // pred_check_branch
        %362 = sbr.rel (%p360) target = $region52
      $region51: #{tpu_custom_call.1} parent=5 // pred_region
        %s363 = ssub.s32 %s20, 2
        // Predicated region
        $region53: #{tpu_custom_call.1} parent=51 // pred_check
          %p364 = pneg %p114
        $region54: #{tpu_custom_call.1} parent=51 // pred_check_branch
          %366 = sbr.rel (%p364) target = $region56
        $region55: #{tpu_custom_call.1} parent=51 // pred_region
          %s367 = sand.u32 %s99, 1
          %s368 = scalar_lea.sflag [#allocation4], %s367
          %s369 = sand.u32 %s99, 1
          %s370 = smul.addr %s369, 8
          %s371 = scalar_lea.vmem [#allocation7], %s370
          %372 = dma.done %s368, 128
        $region56: #{tpu_custom_call.1} parent=51 // pred_fallthru
          _
        // Predicated region
        $region57: #{tpu_custom_call.1} parent=51 // pred_check
          %p373 = pneg %p140
        $region58: #{tpu_custom_call.1} parent=51 // pred_check_branch
          %375 = sbr.rel (%p373) target = $region60
        $region59: #{tpu_custom_call.1} parent=51 // pred_region
          %s376 = sand.u32 %s125, 1
          %s377 = scalar_lea.sflag [#allocation9], %s376
          %s378 = sand.u32 %s125, 1
          %s379 = smul.addr %s378, 8
          %s380 = scalar_lea.vmem [#allocation8], %s379
          %381 = dma.done %s377, 128
        $region60: #{tpu_custom_call.1} parent=51 // pred_fallthru
          _
      $region52: #{tpu_custom_call.1} parent=5 // pred_fallthru
        _
    $region6: #{tpu_custom_call.1} parent=1 // loop_footer
      %s24 = sadd.s32 1, %s20
    $region7: #{tpu_custom_call.1} parent=1 // loop_footer_branch
      %19 = sbr.rel target = $region3
    $region8: #{tpu_custom_call.1} parent=1 // loop_exit
      _
    %382 = vsyncpa [#allocation3], 1
    %s383 = scalar_lea.sflag [#allocation3], 1
    %384 = vsyncpa %s383, 1
    %385 = vsyncpa [#allocation6], 1
    %386 = vsyncpa [#allocation4], 1
    %s387 = scalar_lea.sflag [#allocation4], 1
    %388 = vsyncpa %s387, 1
    %389 = vsyncpa [#allocation9], 1
    %s390 = scalar_lea.sflag [#allocation9], 1
    %391 = vsyncpa %s390, 1

</llo_original>
